<compile_context>
chip_gen: v5e
topology: v5e:2x2
jax: 0.10.0
libtpu: 0.0.40
codegen_flags: <defaults>
</compile_context>

<pallas_src>
import jax
import jax.numpy as jnp
from jax.experimental import pallas as pl
from jax.experimental.pallas import tpu as pltpu

IN = 4        # observation dim (CartPole)
HIDDEN = 128  # fc1 width
OUT = 2       # number of actions
OUT_PAD = 128 # lane-dense padded fc2 output width (padding done once at init)


def policy_kernel(x_ref, w1_ref, b1_ref, w2_ref, b2_ref, o_ref):
    # x_ref : (B, 4)        w1_ref: (4, 128)    b1_ref: (1, 128)
    # w2_ref: (128, 128)    b2_ref: (1, 128)    o_ref : (B, 2)
    x = x_ref[...]          # (B, 4)
    w1 = w1_ref[...]        # (4, 128)

    # fc1 + bias + ReLU: K=4 contraction as 4 unrolled VPU multiply-adds on a
    # single (B,128) f32 slab; accumulator initialized with b1 to fold the bias.
    h = b1_ref[...] + x[:, 0:1] * w1[0, :]
    for k in range(1, IN):                       # static unroll, K is compile-time
        h = h + x[:, k:k + 1] * w1[k, :]
    h = jnp.maximum(h, 0.0)

    # fc2 on the MXU (K=128 is native).  W2/b2 were zero-padded to 128 output
    # lanes once at init, so logits and softmax intermediates are lane-dense.
    logits = jnp.dot(h, w2_ref[...], preferred_element_type=jnp.float32) + b2_ref[...]

    # softmax over dim=0 (batch axis) — matches F.softmax(x, dim=0).
    # The reduction is per column, so the zero-padded columns never mix with
    # the real ones.  Exact division so each column sums to 1 to f32 precision.
    m = jnp.max(logits, axis=0, keepdims=True)
    e = jnp.exp(logits - m)
    probs = e / jnp.sum(e, axis=0, keepdims=True)

    # Store only the 2 real action columns (one masked vst at this size);
    # avoids a separate host-side slice dispatch and (B,128) HBM roundtrip.
    o_ref[...] = probs[:, :OUT].astype(o_ref.dtype)


@jax.jit
def policy_forward(x, w1, b1, w2p, b2p):
    """x: (B,4); w1: (4,128)=W1_torch.T; b1: (1,128);
    w2p: (128,128) pre-padded W2_torch.T; b2p: (1,128) pre-padded b2."""
    B = x.shape[0]
    vmem = pl.BlockSpec(memory_space=pltpu.MemorySpace.VMEM)
    return pl.pallas_call(
        policy_kernel,
        out_shape=jax.ShapeDtypeStruct((B, OUT), jnp.float32),
        in_specs=[vmem, vmem, vmem, vmem, vmem],
        out_specs=vmem,
    )(x, w1, b1, w2p, b2p)


def init_params(key):
    # Deterministic synthetic init (PyTorch Linear-style uniform bounds).
    k1, k2, k3, k4 = jax.random.split(key, 4)
    bound1 = 1.0 / jnp.sqrt(IN)
    bound2 = 1.0 / jnp.sqrt(HIDDEN)
    w1 = jax.random.uniform(k1, (IN, HIDDEN), jnp.float32, -bound1, bound1)   # = W1_torch.T
    b1 = jax.random.uniform(k2, (1, HIDDEN), jnp.float32, -bound1, bound1)
    w2 = jax.random.uniform(k3, (HIDDEN, OUT), jnp.float32, -bound2, bound2)  # = W2_torch.T
    b2 = jax.random.uniform(k4, (1, OUT), jnp.float32, -bound2, bound2)
    return w1, b1, w2, b2


def pad_fc2_params(w2, b2):
    """One-time lane-dense padding of the tiny fc2 output dim (hoisted out of
    the per-call path): (128,2)->(128,128), (1,2)->(1,128)."""
    w2p = jnp.zeros((HIDDEN, OUT_PAD), jnp.float32).at[:, :OUT].set(w2)
    b2p = jnp.zeros((1, OUT_PAD), jnp.float32).at[:, :OUT].set(b2)
    return w2p, b2p


def policy_ref(x, w1, b1, w2, b2):
    h = jnp.maximum(x @ w1 + b1, 0.0)
    logits = h @ w2 + b2
    return jax.nn.softmax(logits, axis=0)


if __name__ == "__main__":
    key = jax.random.PRNGKey(0)
    kx, kp = jax.random.split(key)

    B = 8  # batch of CartPole-style observations, each of dim 4
    x = jax.random.normal(kx, (B, IN), jnp.float32)
    w1, b1, w2, b2 = init_params(kp)
    w2p, b2p = pad_fc2_params(w2, b2)   # done once, reused across all forward calls

    out = policy_forward(x, w1, b1, w2p, b2p)
    out = jax.block_until_ready(out)

    ref = policy_ref(x, w1, b1, w2, b2)
    assert out.shape == (B, OUT)
    assert jnp.allclose(out, ref, atol=1e-4, rtol=1e-4)
    # softmax over dim=0: each output column sums to 1 (exact divide in-kernel)
    assert jnp.allclose(jnp.sum(out, axis=0), jnp.ones((OUT,)), atol=1e-4)

    print("KERNEL_OK")
</pallas_src>

<mosaic_0001>
module attributes {stable_mosaic.version = 11 : i64} {
  func.func @policy_kernel(%arg0: memref<8x4xf32, #tpu.memory_space<vmem>>, %arg1: memref<4x128xf32, #tpu.memory_space<vmem>>, %arg2: memref<1x128xf32, #tpu.memory_space<vmem>>, %arg3: memref<128x128xf32, #tpu.memory_space<vmem>>, %arg4: memref<1x128xf32, #tpu.memory_space<vmem>>, %arg5: memref<8x2xf32, #tpu.memory_space<vmem>>) attributes {dimension_semantics = [], scalar_prefetch = 0 : i64, scratch_operands = 0 : i64, tpu.core_type = #tpu.core_type<tc>} {
    %c0 = arith.constant 0 : index
    %c0_0 = arith.constant 0 : index
    %0 = vector.load %arg0[%c0, %c0_0] : memref<8x4xf32, #tpu.memory_space<vmem>>, vector<8x4xf32>
    %c0_1 = arith.constant 0 : index
    %c0_2 = arith.constant 0 : index
    %1 = vector.load %arg1[%c0_1, %c0_2] : memref<4x128xf32, #tpu.memory_space<vmem>>, vector<4x128xf32>
    %c0_3 = arith.constant 0 : index
    %c0_4 = arith.constant 0 : index
    %2 = vector.load %arg2[%c0_3, %c0_4] : memref<1x128xf32, #tpu.memory_space<vmem>>, vector<1x128xf32>
    %3 = vector.extract_strided_slice %0 {offsets = [0, 0], sizes = [8, 1], strides = [1, 1]} : vector<8x4xf32> to vector<8x1xf32>
    %4 = vector.extract_strided_slice %1 {offsets = [0, 0], sizes = [1, 128], strides = [1, 1]} : vector<4x128xf32> to vector<1x128xf32>
    %5 = vector.shape_cast %4 : vector<1x128xf32> to vector<128xf32>
    %6 = vector.shape_cast %5 : vector<128xf32> to vector<1x128xf32>
    %7 = vector.broadcast %3 : vector<8x1xf32> to vector<8x128xf32>
    %8 = vector.broadcast %6 : vector<1x128xf32> to vector<8x128xf32>
    %9 = arith.mulf %7, %8 : vector<8x128xf32>
    %10 = vector.broadcast %2 : vector<1x128xf32> to vector<8x128xf32>
    %11 = arith.addf %10, %9 : vector<8x128xf32>
    %12 = vector.extract_strided_slice %0 {offsets = [0, 1], sizes = [8, 1], strides = [1, 1]} : vector<8x4xf32> to vector<8x1xf32>
    %13 = vector.extract_strided_slice %1 {offsets = [1, 0], sizes = [1, 128], strides = [1, 1]} : vector<4x128xf32> to vector<1x128xf32>
    %14 = vector.shape_cast %13 : vector<1x128xf32> to vector<128xf32>
    %15 = vector.shape_cast %14 : vector<128xf32> to vector<1x128xf32>
    %16 = vector.broadcast %12 : vector<8x1xf32> to vector<8x128xf32>
    %17 = vector.broadcast %15 : vector<1x128xf32> to vector<8x128xf32>
    %18 = arith.mulf %16, %17 : vector<8x128xf32>
    %19 = arith.addf %11, %18 : vector<8x128xf32>
    %20 = vector.extract_strided_slice %0 {offsets = [0, 2], sizes = [8, 1], strides = [1, 1]} : vector<8x4xf32> to vector<8x1xf32>
    %21 = vector.extract_strided_slice %1 {offsets = [2, 0], sizes = [1, 128], strides = [1, 1]} : vector<4x128xf32> to vector<1x128xf32>
    %22 = vector.shape_cast %21 : vector<1x128xf32> to vector<128xf32>
    %23 = vector.shape_cast %22 : vector<128xf32> to vector<1x128xf32>
    %24 = vector.broadcast %20 : vector<8x1xf32> to vector<8x128xf32>
    %25 = vector.broadcast %23 : vector<1x128xf32> to vector<8x128xf32>
    %26 = arith.mulf %24, %25 : vector<8x128xf32>
    %27 = arith.addf %19, %26 : vector<8x128xf32>
    %28 = vector.extract_strided_slice %0 {offsets = [0, 3], sizes = [8, 1], strides = [1, 1]} : vector<8x4xf32> to vector<8x1xf32>
    %29 = vector.extract_strided_slice %1 {offsets = [3, 0], sizes = [1, 128], strides = [1, 1]} : vector<4x128xf32> to vector<1x128xf32>
    %30 = vector.shape_cast %29 : vector<1x128xf32> to vector<128xf32>
    %31 = vector.shape_cast %30 : vector<128xf32> to vector<1x128xf32>
    %32 = vector.broadcast %28 : vector<8x1xf32> to vector<8x128xf32>
    %33 = vector.broadcast %31 : vector<1x128xf32> to vector<8x128xf32>
    %34 = arith.mulf %32, %33 : vector<8x128xf32>
    %35 = arith.addf %27, %34 : vector<8x128xf32>
    %cst = arith.constant 0.000000e+00 : f32
    %36 = vector.broadcast %cst : f32 to vector<8x128xf32>
    %37 = arith.maximumf %35, %36 : vector<8x128xf32>
    %c0_5 = arith.constant 0 : index
    %c0_6 = arith.constant 0 : index
    %38 = vector.load %arg3[%c0_5, %c0_6] : memref<128x128xf32, #tpu.memory_space<vmem>>, vector<128x128xf32>
    %cst_7 = arith.constant dense<0.000000e+00> : vector<8x128xf32>
    %39 = tpu.matmul %37, %38, %cst_7 {dimension_numbers = #tpu.dot_dimension_numbers<[1], [0], [0], [1], [0, 0, 1, 1], [], []>} : vector<8x128xf32>, vector<128x128xf32>, vector<8x128xf32> -> vector<8x128xf32>
    %c0_8 = arith.constant 0 : index
    %c0_9 = arith.constant 0 : index
    %40 = vector.load %arg4[%c0_8, %c0_9] : memref<1x128xf32, #tpu.memory_space<vmem>>, vector<1x128xf32>
    %41 = vector.broadcast %40 : vector<1x128xf32> to vector<8x128xf32>
    %42 = arith.addf %39, %41 : vector<8x128xf32>
    %cst_10 = arith.constant dense<0xFF800000> : vector<128xf32>
    %43 = vector.multi_reduction <maximumf>, %42, %cst_10 [0] : vector<8x128xf32> to vector<128xf32>
    %44 = vector.shape_cast %43 : vector<128xf32> to vector<1x128xf32>
    %45 = vector.broadcast %44 : vector<1x128xf32> to vector<8x128xf32>
    %46 = arith.subf %42, %45 : vector<8x128xf32>
    %47 = math.exp %46 : vector<8x128xf32>
    %cst_11 = arith.constant dense<0.000000e+00> : vector<128xf32>
    %48 = vector.multi_reduction <add>, %47, %cst_11 [0] : vector<8x128xf32> to vector<128xf32>
    %49 = vector.shape_cast %48 : vector<128xf32> to vector<1x128xf32>
    %50 = vector.broadcast %49 : vector<1x128xf32> to vector<8x128xf32>
    %51 = arith.divf %47, %50 : vector<8x128xf32>
    %52 = vector.extract_strided_slice %51 {offsets = [0, 0], sizes = [8, 2], strides = [1, 1]} : vector<8x128xf32> to vector<8x2xf32>
    %c0_12 = arith.constant 0 : index
    %c0_13 = arith.constant 0 : index
    %53 = vector.load %arg5[%c0_12, %c0_13] : memref<8x2xf32, #tpu.memory_space<vmem>>, vector<8x2xf32>
    tpu.vector_store %arg5[%c0_12, %c0_13], %52 {strides = array<i32>} : memref<8x2xf32, #tpu.memory_space<vmem>>, vector<8x2xf32>,
    return
  }
}

</mosaic_0001>

<llo_original>
// kernel: policy_forward.1
$region0: #{policy_forward.1}
  #allocation0 [shape = 'u32[]', space=smem, size = 0x4, offset = 0x4, fixed_abs, tag = 'smem constant byte address 0x4 - core index']
  #allocation1 [shape = 'u32[72,128]{1,0:T(1,128)}', space=vmem, size = 0x9000, scoped, tag = 'internal scratch']
  %s0 = inlined_call_operand.vmem [shape: f32[8,4], index: 0, kind: input, shape index: {}]
  %s1 = inlined_call_operand.vmem [shape: f32[4,128], index: 1, kind: input, shape index: {}]
  %s2 = inlined_call_operand.vmem [shape: f32[1,128], index: 2, kind: input, shape index: {}]
  %s3 = inlined_call_operand.hbm [shape: f32[128,128], index: 3, kind: input, shape index: {}]
  %s4 = inlined_call_operand.vmem [shape: f32[1,128], index: 4, kind: input, shape index: {}]
  %s5 = inlined_call_operand.vmem [shape: f32[8,2], index: 5, kind: output, shape index: {}]
  %s6 = sld [smem:[#allocation0]]
  $region34: #{policy_forward.1} parent=0
    _
  %s8 = ssub.s32 1, %s6
  %s9 = scalar_select 0, %s8, %s6
  $region1: #{policy_forward.1} parent=0
    #allocation2 [shape = 'u8[65536]{0}', space=vmem, size = 0x10000, scoped, tag = 'input window, operand 3, single buffered']
    #allocation3 [shape = 's32[1]{0}', space=sflag, size = 0x4, scoped, tag = 'scoped memory for policy_forward.1']
    %10 = vsyncpa [#allocation3], 0
    // Predicated region
    $region2: #{policy_forward.1} parent=1 // pred_check
      _
    $region3: #{policy_forward.1} parent=1 // pred_check_branch
      %12 = sbr.rel (0) target = $region5
    $region4: #{policy_forward.1} parent=1 // pred_region
      _
    $region5: #{policy_forward.1} parent=1 // pred_fallthru
      _
    // Predicated region
    $region6: #{policy_forward.1} parent=1 // pred_check
      _
    $region7: #{policy_forward.1} parent=1 // pred_check_branch
      %14 = sbr.rel (0) target = $region9
    $region8: #{policy_forward.1} parent=1 // pred_region
      _
    $region9: #{policy_forward.1} parent=1 // pred_fallthru
      _
    // Predicated region
    $region10: #{policy_forward.1} parent=1 // pred_check
      _
    $region11: #{policy_forward.1} parent=1 // pred_check_branch
      %16 = sbr.rel (0) target = $region13
    $region12: #{policy_forward.1} parent=1 // pred_region
      _
    $region13: #{policy_forward.1} parent=1 // pred_fallthru
      _
    // Predicated region
    $region14: #{policy_forward.1} parent=1 // pred_check
      _
    $region15: #{policy_forward.1} parent=1 // pred_check_branch
      %18 = sbr.rel (0) target = $region17
    $region16: #{policy_forward.1} parent=1 // pred_region
      %20 = vsyncadd [#allocation3], 0
      %s21 = sshll.u32 %s3, 4
      %s22 = int_to_ptr.hbm [resolvable:$true] %s21
      %s23 = sshll.u32 [#allocation2], 4
      %s24 = int_to_ptr.vmem [resolvable:$true] %s23
      %29 = dma.hbm_to_vmem [thread:$0]  %s22, 2048, %s24, [#allocation3], 128, 128, 8
    $region17: #{policy_forward.1} parent=1 // pred_fallthru
      _
    // Predicated region
    $region18: #{policy_forward.1} parent=1 // pred_check
      _
    $region19: #{policy_forward.1} parent=1 // pred_check_branch
      %31 = sbr.rel (0) target = $region21
    $region20: #{policy_forward.1} parent=1 // pred_region
      _
    $region21: #{policy_forward.1} parent=1 // pred_fallthru
      _
    // Predicated region
    $region22: #{policy_forward.1} parent=1 // pred_check
      _
    $region23: #{policy_forward.1} parent=1 // pred_check_branch
      %33 = sbr.rel (0) target = $region25
    $region24: #{policy_forward.1} parent=1 // pred_region
      %35 = dma.done [#allocation3], 2048
    $region25: #{policy_forward.1} parent=1 // pred_fallthru
      _
    %v36 = vld [vmem:[%s0] sm:$0xff]
    %v37 = vld [vmem:[%s1] sm:$0xf]
    %v38 = vld [vmem:[%s2] sm:$0x1]
    %40 = vset.pattern.permute.xlu0 0
    %41 = vperm.xlu0 %40, %v36
    %v42 = vpop.permute.xlu0 %41
    %v44 = vperm.slane %v37, 0
    %v45 = vmul.f32 %v42, %v44
    %v47 = vperm.slane %v38, 0
    %v49 = vadd.f32 %v47, %v45
    %50 = vset.pattern.permute.xlu0 1
    %51 = vperm.xlu0 %50, %v36
    %v52 = vpop.permute.xlu0 %51
    %v54 = vperm.slane %v37, 1
    %v55 = vmul.f32 %v52, %v54
    %v56 = vadd.f32 %v49, %v55
    %57 = vset.pattern.permute.xlu0 2
    %58 = vperm.xlu0 %57, %v36
    %v59 = vpop.permute.xlu0 %58
    %v61 = vperm.slane %v37, 2
    %v62 = vmul.f32 %v59, %v61
    %v63 = vadd.f32 %v56, %v62
    %64 = vset.pattern.permute.xlu0 3
    %65 = vperm.xlu0 %64, %v36
    %v66 = vpop.permute.xlu0 %65
    %v68 = vperm.slane %v37, 3
    %v69 = vmul.f32 %v66, %v68
    %v70 = vadd.f32 %v63, %v69
    %v71 = vmax.f32 %v70, 0.0
    %v72 = vld [vmem:[#allocation2] sm:$0xff]
    %v73 = vld [vmem:[#allocation2 + $0x8] sm:$0xff]
    %v74 = vld [vmem:[#allocation2 + $0x10] sm:$0xff]
    %v75 = vld [vmem:[#allocation2 + $0x18] sm:$0xff]
    %v76 = vld [vmem:[#allocation2 + $0x20] sm:$0xff]
    %v77 = vld [vmem:[#allocation2 + $0x28] sm:$0xff]
    %v78 = vld [vmem:[#allocation2 + $0x30] sm:$0xff]
    %v79 = vld [vmem:[#allocation2 + $0x38] sm:$0xff]
    %v80 = vld [vmem:[#allocation2 + $0x40] sm:$0xff]
    %v81 = vld [vmem:[#allocation2 + $0x48] sm:$0xff]
    %v82 = vld [vmem:[#allocation2 + $0x50] sm:$0xff]
    %v83 = vld [vmem:[#allocation2 + $0x58] sm:$0xff]
    %v84 = vld [vmem:[#allocation2 + $0x60] sm:$0xff]
    %v85 = vld [vmem:[#allocation2 + $0x68] sm:$0xff]
    %v86 = vld [vmem:[#allocation2 + $0x70] sm:$0xff]
    %v87 = vld [vmem:[#allocation2 + $0x78] sm:$0xff]
    %v88 = vld [vmem:[%s4] sm:$0x1]
    %v90 = vperm.slane %v88, 0
    %92 = vmatpush.msra.mxu0 %v87
    %93 = vmatpush.msra.mxu0 %v86
    %94 = vmatpush.msra.mxu0 %v85
    %95 = vmatpush.msra.mxu0 %v84
    %96 = vmatpush.msra.mxu0 %v83
    %97 = vmatpush.msra.mxu0 %v82
    %98 = vmatpush.msra.mxu0 %v81
    %99 = vmatpush.msra.mxu0 %v80
    %100 = vmatpush.msra.mxu0 %v79
    %101 = vmatpush.msra.mxu0 %v78
    %102 = vmatpush.msra.mxu0 %v77
    %103 = vmatpush.msra.mxu0 %v76
    %104 = vmatpush.msra.mxu0 %v75
    %105 = vmatpush.msra.mxu0 %v74
    %106 = vmatpush.msra.mxu0 %v73
    %107 = vmatpush.msra.mxu0 %v72
    %108 = vmatmul.f32.gmra.mxu0 %v71
    %v109 = vpop.f32.mrf.mxu0
    %v110 = vadd.f32 %v90, %v109
    %111 = vdwg.mxu0
    %v112 = vrot.slane %v110, 4
    %v113 = vmax.f32 %v110, %v112
    %v114 = vrot.slane %v113, 2
    %v115 = vmax.f32 %v113, %v114
    %v116 = vrot.slane %v115, 1
    %v117 = vmax.f32 %v115, %v116
    %v118 = vsub.f32 %v110, %v117
    %v119 = vmul.f32 %v118, 1.442695
    %v120 = vpow.pop %v119
    %v121 = vrot.slane %v120, 4
    %v122 = vadd.f32 %v120, %v121
    %v123 = vrot.slane %v122, 2
    %v124 = vadd.f32 %v122, %v123
    %v125 = vrot.slane %v124, 1
    %v126 = vadd.f32 %v124, %v125
    %v127 = vrcp.pop %v126
    %v128 = vmul.f32 %v126, %v127
    %v129 = vsub.f32 1.0, %v128
    %v130 = vmul.f32 %v127, %v129
    %v131 = vadd.f32 %v127, %v130
    %vm132 = vweird.f32 %v126
    %vm133 = vweird.f32 %v127
    %vm134 = vmor %vm132, %vm133
    %v135 = vsel %vm134, %v127, %v131
    %v136 = vand.u32 2147483647, %v126
    %vm137 = vcmp.eq.f32.partialorder %v136, 8.507059e+37
    %v138 = vand.u32 %v126, 2147483648
    %v139 = vor.u32 1.1754944e-38, %v138
    %v140 = vsel %vm137, %v139, %v135
    %v141 = vmul.f32 %v120, %v140
    %vm142 = vcmask 15360
    %143 = vst.msk [vmem:[%s5] sm:$0xff] %vm142, %v141
    // Predicated region
    $region26: #{policy_forward.1} parent=1 // pred_check
      _
    $region27: #{policy_forward.1} parent=1 // pred_check_branch
      %145 = sbr.rel (0) target = $region29
    $region28: #{policy_forward.1} parent=1 // pred_region
      _
    $region29: #{policy_forward.1} parent=1 // pred_fallthru
      _
    // Predicated region
    $region30: #{policy_forward.1} parent=1 // pred_check
      _
    $region31: #{policy_forward.1} parent=1 // pred_check_branch
      %147 = sbr.rel (0) target = $region33
    $region32: #{policy_forward.1} parent=1 // pred_region
      _
    $region33: #{policy_forward.1} parent=1 // pred_fallthru
      _
    %148 = vsyncpa [#allocation3], 1

</llo_original>
